<compile_context>
chip_gen: v7x
topology: tpu7x:2x2x1
jax: 0.10.0
libtpu: 0.0.40
codegen_flags: <defaults>
</compile_context>

<pallas_src>
import math

import jax
import jax.numpy as jnp
from jax.experimental import pallas as pl
from jax.experimental.pallas import tpu as pltpu


def _cdiv(a, b):
    return (a + b - 1) // b


def _round_up(x, m):
    return _cdiv(x, m) * m


# ----------------------------------------------------------------------------
# Fused MLP kernel: (x @ W0 + b0) -> ReLU -> ... -> (x @ W_last + b_last)
# ----------------------------------------------------------------------------
def _make_mlp_kernel(n_layers, use_bf16_matmul):
    mm_dtype = jnp.bfloat16 if use_bf16_matmul else jnp.float32

    def kernel(*refs):
        # refs = (x_ref, w0_ref, b0_ref, ..., w_{L-1}_ref, b_{L-1}_ref, o_ref)
        x_ref = refs[0]
        o_ref = refs[-1]
        wb = refs[1:-1]
        h = x_ref[...]
        for i in range(n_layers):
            w = wb[2 * i][...]        # (K_i, N_i), hidden N_i padded to 128 lanes
            b = wb[2 * i + 1][...]    # (1, N_i)
            h = jnp.dot(h.astype(mm_dtype), w.astype(mm_dtype),
                        preferred_element_type=jnp.float32) + b
            if i < n_layers - 1:
                h = jnp.maximum(h, 0.0)
        o_ref[...] = h.astype(o_ref.dtype)

    return kernel


def _choose_batch_tiling(B, tb_target):
    """Derive (TB, B_pad, n_tiles) minimizing padded rows; prefer >=2 tiles for v7x."""
    n_tiles = max(1, _cdiv(B, tb_target))
    # Prefer >=2 tiles (megacore sharding on v7x) once the batch is big enough that
    # splitting is not pure per-step overhead.
    if n_tiles == 1 and B >= 512:
        n_tiles = 2
    TB = _round_up(_cdiv(B, n_tiles), 8)     # sublane-aligned batch tile
    return TB, TB * n_tiles, n_tiles


def ffnn_forward_pallas(padded_params, x, out_size, tb_target=512,
                        use_bf16_matmul=False):
    """padded_params: list of (w_t (K_i, N_i), b (1, N_i)); hidden N_i padded to 128
    lanes, final N == out_size.  x: (B, K0) f32.  Returns (B, out_size) f32."""
    B, K0 = x.shape
    n_layers = len(padded_params)
    assert padded_params[0][0].shape[0] == K0
    assert padded_params[-1][0].shape[1] == out_size

    TB, B_pad, n_tiles = _choose_batch_tiling(B, tb_target)
    if B_pad != B:
        x = jnp.pad(x, ((0, B_pad - B), (0, 0)))

    in_specs = [pl.BlockSpec((TB, K0), lambda i: (i, 0))]
    inputs = [x]
    flops = 0
    w_bytes = 0
    for w_t, b in padded_params:
        # Full-array blocks with a constant index_map: weights/biases stay VMEM
        # resident across all batch tiles (loaded once, reused by every grid step).
        in_specs.append(pl.BlockSpec(w_t.shape, lambda i: (0, 0)))
        in_specs.append(pl.BlockSpec(b.shape, lambda i: (0, 0)))
        inputs.append(w_t)
        inputs.append(b)
        flops += 2 * B_pad * w_t.shape[0] * w_t.shape[1] + 2 * B_pad * w_t.shape[1]
        w_bytes += w_t.size * w_t.dtype.itemsize + b.size * b.dtype.itemsize

    # Explicit VMEM budget: Pallas double-buffers every input (even constant
    # index_map), plus double-buffered x/out tiles, live activations, headroom.
    max_w = max([K0] + [w.shape[1] for w, _ in padded_params])
    act_bytes = 4 * TB * max_w * 4
    io_bytes = 2 * TB * K0 * 4 + 2 * TB * out_size * 4
    vmem_limit = min(_round_up(2 * w_bytes + io_bytes + act_bytes, 1 << 20) + (8 << 20),
                     64 << 20)

    bytes_accessed = (B_pad * K0 + B_pad * out_size) * 4 + w_bytes

    out = pl.pallas_call(
        _make_mlp_kernel(n_layers, use_bf16_matmul),
        out_shape=jax.ShapeDtypeStruct((B_pad, out_size), x.dtype),
        grid=(n_tiles,),
        in_specs=in_specs,
        out_specs=pl.BlockSpec((TB, out_size), lambda i: (i, 0)),
        compiler_params=pltpu.CompilerParams(
            dimension_semantics=("parallel",),
            vmem_limit_bytes=vmem_limit,
        ),
        cost_estimate=pl.CostEstimate(
            flops=flops, transcendentals=0, bytes_accessed=bytes_accessed),
    )(*inputs)

    return out[:B, :]


ffnn_forward = jax.jit(
    ffnn_forward_pallas,
    static_argnames=("out_size", "tb_target", "use_bf16_matmul"))


# ----------------------------------------------------------------------------
# FFNN_non_linear: parameter setup (mirrors the PyTorch module) + reference
# ----------------------------------------------------------------------------
def layer_utility(in_size, out_size, n_hidd_layers, nodes):
    layer_nodes = list(nodes)
    layer_nodes.append(out_size)
    layer_nodes.insert(0, in_size)
    channels = []
    for ind in range(n_hidd_layers + 1):
        channels.append((layer_nodes[:-1][ind], layer_nodes[1:][ind]))
    return channels


def init_params(key, channels_tuple, init_weights="x_n"):
    """Init mirroring the PyTorch module. Weights stored PRE-TRANSPOSED as
    (in_c, out_c); biases stored as (1, out_c)."""
    params = []
    for (in_c, out_c) in channels_tuple:
        key, kw, kb = jax.random.split(key, 3)
        if init_weights == "x_n":
            std = math.sqrt(2.0 / (in_c + out_c))         # xavier_normal_
            w_t = jax.random.normal(kw, (in_c, out_c), jnp.float32) * std
            b = jax.random.normal(kb, (out_c,), jnp.float32)
        elif init_weights == "x_u":
            bound = math.sqrt(6.0 / (in_c + out_c))       # xavier_uniform_
            w_t = jax.random.uniform(kw, (in_c, out_c), jnp.float32, -bound, bound)
            b = jax.random.uniform(kb, (out_c,), jnp.float32, 0.0, 1.0)
        elif init_weights == "ones":
            w_t = jnp.ones((in_c, out_c), jnp.float32)
            b = jnp.ones((out_c,), jnp.float32)
        else:  # 'zeros' or passthrough
            w_t = jnp.zeros((in_c, out_c), jnp.float32)
            b = jnp.zeros((out_c,), jnp.float32)
        params.append((w_t, b.reshape(1, out_c)))
    return params


def pad_params_for_kernel(params, lane=128):
    """Zero-pad every HIDDEN layer's output width to a multiple of `lane` (and each
    subsequent layer's input to match).  The FINAL layer's output width is left at
    out_size so the output store/writeback carries no padded lanes.  The first
    layer's input is left at K0 to match x (no inflated input traffic).  Zero
    columns + zero biases + ReLU keep the math exact."""
    n = len(params)
    padded = []
    prev_out_pad = None
    for i, (w_t, b) in enumerate(params):
        in_c, out_c = w_t.shape
        in_pad = in_c if i == 0 else prev_out_pad
        out_pad = out_c if i == n - 1 else _round_up(out_c, lane)
        w_p = jnp.zeros((in_pad, out_pad), w_t.dtype).at[:in_c, :out_c].set(w_t)
        b_p = jnp.zeros((1, out_pad), b.dtype).at[:, :out_c].set(b)
        padded.append((w_p, b_p))
        prev_out_pad = out_pad
    return padded


def ffnn_forward_ref(params, x):
    """Plain-JAX reference (unpadded params)."""
    n = len(params)
    for i, (w_t, b) in enumerate(params):
        x = x @ w_t + b
        if i < n - 1:
            x = jnp.maximum(x, 0.0)
    return x


if __name__ == "__main__":
    key = jax.random.PRNGKey(0)

    # Small config consistent with the module: 2 hidden layers.
    input_size = 32
    output_size = 1
    nodes = [32, 16]
    n_hidd_layers = len(nodes)

    channels = layer_utility(input_size, output_size, n_hidd_layers, nodes)
    kp, kx1, kx2 = jax.random.split(key, 3)
    params = init_params(kp, channels, init_weights="x_n")
    padded_params = pad_params_for_kernel(params)

    # 1) Toy batch (single tile).
    x_small = jax.random.normal(kx1, (8, input_size), jnp.float32)
    out_small = jax.block_until_ready(
        ffnn_forward(padded_params, x_small, out_size=output_size))
    ref_small = jax.block_until_ready(ffnn_forward_ref(params, x_small))
    assert out_small.shape == (8, output_size), out_small.shape
    assert jnp.allclose(out_small, ref_small, atol=1e-5, rtol=1e-5)

    # 2) Batch that is not a multiple of the tile -> exercises multi-tile grid and
    #    minimal row padding (tb_target=128 forces 3 grid steps, B_pad=312).
    x_big = jax.random.normal(kx2, (300, input_size), jnp.float32)
    out_big = jax.block_until_ready(
        ffnn_forward(padded_params, x_big, out_size=output_size, tb_target=128))
    ref_big = jax.block_until_ready(ffnn_forward_ref(params, x_big))
    assert out_big.shape == (300, output_size), out_big.shape
    assert jnp.allclose(out_big, ref_big, atol=1e-5, rtol=1e-5)

    # 3) bf16-matmul path (v6e/v7x MXU): compile + sanity check only (accumulation
    #    stays f32; exact parity with the f32 reference is not expected).
    out_bf16 = jax.block_until_ready(
        ffnn_forward(padded_params, x_small, out_size=output_size,
                     use_bf16_matmul=True))
    assert out_bf16.shape == (8, output_size)
    assert bool(jnp.all(jnp.isfinite(out_bf16)))

    print("KERNEL_OK")
</pallas_src>

<mosaic_0001>
module attributes {stable_mosaic.version = 11 : i64} {
  func.func @kernel(%arg0: i32, %arg1: memref<8x32xf32, #tpu.memory_space<vmem>>, %arg2: memref<32x128xf32, #tpu.memory_space<vmem>>, %arg3: memref<1x128xf32, #tpu.memory_space<vmem>>, %arg4: memref<128x128xf32, #tpu.memory_space<vmem>>, %arg5: memref<1x128xf32, #tpu.memory_space<vmem>>, %arg6: memref<128x1xf32, #tpu.memory_space<vmem>>, %arg7: memref<1x1xf32, #tpu.memory_space<vmem>>, %arg8: memref<8x1xf32, #tpu.memory_space<vmem>>) attributes {dimension_semantics = [#tpu.dimension_semantics<parallel>], iteration_bounds = array<i64: 1>, scalar_prefetch = 0 : i64, scratch_operands = 0 : i64, tpu.core_type = #tpu.core_type<tc>, window_params = [{transform_indices = @transform_0, window_bounds = array<i64: 8, 32>}, {pipeline_mode = #tpu.pipeline_mode<synchronous>, transform_indices = @transform_1, window_bounds = array<i64: 32, 128>}, {pipeline_mode = #tpu.pipeline_mode<synchronous>, transform_indices = @transform_2, window_bounds = array<i64: 1, 128>}, {pipeline_mode = #tpu.pipeline_mode<synchronous>, transform_indices = @transform_3, window_bounds = array<i64: 128, 128>}, {pipeline_mode = #tpu.pipeline_mode<synchronous>, transform_indices = @transform_4, window_bounds = array<i64: 1, 128>}, {pipeline_mode = #tpu.pipeline_mode<synchronous>, transform_indices = @transform_5, window_bounds = array<i64: 128, 1>}, {pipeline_mode = #tpu.pipeline_mode<synchronous>, transform_indices = @transform_6, window_bounds = array<i64: 1, 1>}, {transform_indices = @transform_7, window_bounds = array<i64: 8, 1>}]} {
    %c0 = arith.constant 0 : index
    %c0_0 = arith.constant 0 : index
    %0 = vector.load %arg1[%c0, %c0_0] : memref<8x32xf32, #tpu.memory_space<vmem>>, vector<8x32xf32>
    %c0_1 = arith.constant 0 : index
    %c0_2 = arith.constant 0 : index
    %1 = vector.load %arg2[%c0_1, %c0_2] : memref<32x128xf32, #tpu.memory_space<vmem>>, vector<32x128xf32>
    %c0_3 = arith.constant 0 : index
    %c0_4 = arith.constant 0 : index
    %2 = vector.load %arg3[%c0_3, %c0_4] : memref<1x128xf32, #tpu.memory_space<vmem>>, vector<1x128xf32>
    %cst = arith.constant dense<0.000000e+00> : vector<8x128xf32>
    %3 = tpu.matmul %0, %1, %cst {dimension_numbers = #tpu.dot_dimension_numbers<[1], [0], [0], [1], [0, 0, 1, 1], [], []>} : vector<8x32xf32>, vector<32x128xf32>, vector<8x128xf32> -> vector<8x128xf32>
    %4 = vector.broadcast %2 : vector<1x128xf32> to vector<8x128xf32>
    %5 = arith.addf %3, %4 : vector<8x128xf32>
    %cst_5 = arith.constant 0.000000e+00 : f32
    %6 = vector.broadcast %cst_5 : f32 to vector<8x128xf32>
    %7 = arith.maximumf %5, %6 : vector<8x128xf32>
    %c0_6 = arith.constant 0 : index
    %c0_7 = arith.constant 0 : index
    %8 = vector.load %arg4[%c0_6, %c0_7] : memref<128x128xf32, #tpu.memory_space<vmem>>, vector<128x128xf32>
    %c0_8 = arith.constant 0 : index
    %c0_9 = arith.constant 0 : index
    %9 = vector.load %arg5[%c0_8, %c0_9] : memref<1x128xf32, #tpu.memory_space<vmem>>, vector<1x128xf32>
    %cst_10 = arith.constant dense<0.000000e+00> : vector<8x128xf32>
    %10 = tpu.matmul %7, %8, %cst_10 {dimension_numbers = #tpu.dot_dimension_numbers<[1], [0], [0], [1], [0, 0, 1, 1], [], []>} : vector<8x128xf32>, vector<128x128xf32>, vector<8x128xf32> -> vector<8x128xf32>
    %11 = vector.broadcast %9 : vector<1x128xf32> to vector<8x128xf32>
    %12 = arith.addf %10, %11 : vector<8x128xf32>
    %cst_11 = arith.constant 0.000000e+00 : f32
    %13 = vector.broadcast %cst_11 : f32 to vector<8x128xf32>
    %14 = arith.maximumf %12, %13 : vector<8x128xf32>
    %c0_12 = arith.constant 0 : index
    %c0_13 = arith.constant 0 : index
    %15 = vector.load %arg6[%c0_12, %c0_13] : memref<128x1xf32, #tpu.memory_space<vmem>>, vector<128x1xf32>
    %c0_14 = arith.constant 0 : index
    %c0_15 = arith.constant 0 : index
    %16 = vector.load %arg7[%c0_14, %c0_15] : memref<1x1xf32, #tpu.memory_space<vmem>>, vector<1x1xf32>
    %cst_16 = arith.constant dense<0.000000e+00> : vector<8x1xf32>
    %17 = tpu.matmul %14, %15, %cst_16 {dimension_numbers = #tpu.dot_dimension_numbers<[1], [0], [0], [1], [0, 0, 1, 1], [], []>} : vector<8x128xf32>, vector<128x1xf32>, vector<8x1xf32> -> vector<8x1xf32>
    %18 = vector.broadcast %16 : vector<1x1xf32> to vector<8x1xf32>
    %19 = arith.addf %17, %18 : vector<8x1xf32>
    %c0_17 = arith.constant 0 : index
    %c0_18 = arith.constant 0 : index
    %20 = vector.load %arg8[%c0_17, %c0_18] : memref<8x1xf32, #tpu.memory_space<vmem>>, vector<8x1xf32>
    tpu.vector_store %arg8[%c0_17, %c0_18], %19 {strides = array<i32>} : memref<8x1xf32, #tpu.memory_space<vmem>>, vector<8x1xf32>,
    return
  }
  func.func @transform_0(%arg0: i32) -> (i32, i32) {
    %c0_i32 = arith.constant 0 : i32
    %c0_i32_0 = arith.constant 0 : i32
    return %arg0, %c0_i32 : i32, i32
  }
  func.func @transform_1(%arg0: i32) -> (i32, i32) {
    %c0_i32 = arith.constant 0 : i32
    %c0_i32_0 = arith.constant 0 : i32
    %c0_i32_1 = arith.constant 0 : i32
    return %c0_i32, %c0_i32_0 : i32, i32
  }
  func.func @transform_2(%arg0: i32) -> (i32, i32) {
    %c0_i32 = arith.constant 0 : i32
    %c0_i32_0 = arith.constant 0 : i32
    %c0_i32_1 = arith.constant 0 : i32
    return %c0_i32, %c0_i32_0 : i32, i32
  }
  func.func @transform_3(%arg0: i32) -> (i32, i32) {
    %c0_i32 = arith.constant 0 : i32
    %c0_i32_0 = arith.constant 0 : i32
    %c0_i32_1 = arith.constant 0 : i32
    return %c0_i32, %c0_i32_0 : i32, i32
  }
  func.func @transform_4(%arg0: i32) -> (i32, i32) {
    %c0_i32 = arith.constant 0 : i32
    %c0_i32_0 = arith.constant 0 : i32
    %c0_i32_1 = arith.constant 0 : i32
    return %c0_i32, %c0_i32_0 : i32, i32
  }
  func.func @transform_5(%arg0: i32) -> (i32, i32) {
    %c0_i32 = arith.constant 0 : i32
    %c0_i32_0 = arith.constant 0 : i32
    %c0_i32_1 = arith.constant 0 : i32
    return %c0_i32, %c0_i32_0 : i32, i32
  }
  func.func @transform_6(%arg0: i32) -> (i32, i32) {
    %c0_i32 = arith.constant 0 : i32
    %c0_i32_0 = arith.constant 0 : i32
    %c0_i32_1 = arith.constant 0 : i32
    return %c0_i32, %c0_i32_0 : i32, i32
  }
  func.func @transform_7(%arg0: i32) -> (i32, i32) {
    %c0_i32 = arith.constant 0 : i32
    %c0_i32_0 = arith.constant 0 : i32
    return %arg0, %c0_i32 : i32, i32
  }
}

</mosaic_0001>

<llo_original>
// kernel: ffnn_forward_pallas.1
$region0: #{ffnn_forward_pallas.1}
  #allocation0 [shape = 'u32[]', space=smem, size = 0x4, offset = 0x4, fixed_abs, tag = 'smem constant byte address 0x4 - core index']
  #allocation1 [shape = 'u32[144,128]{1,0:T(1,128)}', space=vmem, size = 0x12000, scoped, tag = 'internal scratch']
  #allocation2 [shape = 'f32[1,1]{1,0:T(1,128)S(1)}', space=vmem, size = 0x200, scoped, tag = 'scoped memory for ffnn_forward_pallas.1']
  %s0 = inlined_call_operand.vmem [shape: f32[8,32], index: 0, kind: input, shape index: {}]
  %s1 = inlined_call_operand.hbm [shape: f32[32,128], index: 1, kind: input, shape index: {}]
  %s2 = inlined_call_operand.vmem [shape: f32[1,128], index: 2, kind: input, shape index: {}]
  %s3 = inlined_call_operand.vmem [shape: f32[128,128], index: 3, kind: input, shape index: {}]
  %s4 = inlined_call_operand.vmem [shape: f32[1,128], index: 4, kind: input, shape index: {}]
  %s5 = inlined_call_operand.vmem [shape: f32[128,1], index: 5, kind: input, shape index: {}]
  %s6 = inlined_call_operand.<no memory space> [shape: f32[1,1], index: 6, kind: input, shape index: {}]
  %s7 = inlined_call_operand.vmem [shape: f32[8,1], index: 7, kind: output, shape index: {}]
  %s8 = sld [smem:[#allocation0]]
  $region42: #{ffnn_forward_pallas.1} parent=0
    _
  %s10 = ssub.s32 1, %s8
  %s11 = scalar_select 0, %s10, %s8
  %v12 = vstv %s6
  %13 = vst [vmem:[#allocation2] sm:$0x1] %v12
  $region1: #{ffnn_forward_pallas.1} parent=0
    #allocation3 [shape = 'u8[16384]{0}', space=vmem, size = 0x4000, scoped, tag = 'input window, operand 1, single buffered']
    #allocation4 [shape = 's32[1]{0}', space=sflag, size = 0x4, scoped, tag = 'scoped memory for ffnn_forward_pallas.1']
    %14 = vsyncpa [#allocation4], 0
    // Predicated region
    $region2: #{ffnn_forward_pallas.1} parent=1 // pred_check
      _
    $region3: #{ffnn_forward_pallas.1} parent=1 // pred_check_branch
      %16 = sbr.rel (0) target = $region5
    $region4: #{ffnn_forward_pallas.1} parent=1 // pred_region
      _
    $region5: #{ffnn_forward_pallas.1} parent=1 // pred_fallthru
      _
    // Predicated region
    $region6: #{ffnn_forward_pallas.1} parent=1 // pred_check
      _
    $region7: #{ffnn_forward_pallas.1} parent=1 // pred_check_branch
      %18 = sbr.rel (0) target = $region9
    $region8: #{ffnn_forward_pallas.1} parent=1 // pred_region
      %s20 = ssub.s32 512, 512
      %21 = vsyncadd [#allocation4], %s20
      %s22 = sshll.u32 [#allocation3], 4
      %s23 = int_to_ptr.vmem [resolvable:$true] %s22
      %28 = dma.hbm_to_vmem [thread:$0]  %s1, 512, %s23, [#allocation4], 128, 128, 8
    $region9: #{ffnn_forward_pallas.1} parent=1 // pred_fallthru
      _
    // Predicated region
    $region10: #{ffnn_forward_pallas.1} parent=1 // pred_check
      _
    $region11: #{ffnn_forward_pallas.1} parent=1 // pred_check_branch
      %30 = sbr.rel (0) target = $region13
    $region12: #{ffnn_forward_pallas.1} parent=1 // pred_region
      _
    $region13: #{ffnn_forward_pallas.1} parent=1 // pred_fallthru
      _
    // Predicated region
    $region14: #{ffnn_forward_pallas.1} parent=1 // pred_check
      _
    $region15: #{ffnn_forward_pallas.1} parent=1 // pred_check_branch
      %32 = sbr.rel (0) target = $region17
    $region16: #{ffnn_forward_pallas.1} parent=1 // pred_region
      _
    $region17: #{ffnn_forward_pallas.1} parent=1 // pred_fallthru
      _
    // Predicated region
    $region18: #{ffnn_forward_pallas.1} parent=1 // pred_check
      _
    $region19: #{ffnn_forward_pallas.1} parent=1 // pred_check_branch
      %34 = sbr.rel (0) target = $region21
    $region20: #{ffnn_forward_pallas.1} parent=1 // pred_region
      _
    $region21: #{ffnn_forward_pallas.1} parent=1 // pred_fallthru
      _
    // Predicated region
    $region22: #{ffnn_forward_pallas.1} parent=1 // pred_check
      _
    $region23: #{ffnn_forward_pallas.1} parent=1 // pred_check_branch
      %36 = sbr.rel (0) target = $region25
    $region24: #{ffnn_forward_pallas.1} parent=1 // pred_region
      _
    $region25: #{ffnn_forward_pallas.1} parent=1 // pred_fallthru
      _
    // Predicated region
    $region26: #{ffnn_forward_pallas.1} parent=1 // pred_check
      _
    $region27: #{ffnn_forward_pallas.1} parent=1 // pred_check_branch
      %38 = sbr.rel (0) target = $region29
    $region28: #{ffnn_forward_pallas.1} parent=1 // pred_region
      _
    $region29: #{ffnn_forward_pallas.1} parent=1 // pred_fallthru
      _
    // Predicated region
    $region30: #{ffnn_forward_pallas.1} parent=1 // pred_check
      _
    $region31: #{ffnn_forward_pallas.1} parent=1 // pred_check_branch
      %40 = sbr.rel (0) target = $region33
    $region32: #{ffnn_forward_pallas.1} parent=1 // pred_region
      %41 = dma.done [#allocation4], 512
    $region33: #{ffnn_forward_pallas.1} parent=1 // pred_fallthru
      _
    %v42 = vld [vmem:[%s0] sm:$0xff]
    %v43 = vld [vmem:[#allocation3] sm:$0xff]
    %v44 = vld [vmem:[#allocation3 + $0x8] sm:$0xff]
    %v45 = vld [vmem:[#allocation3 + $0x10] sm:$0xff]
    %v46 = vld [vmem:[#allocation3 + $0x18] sm:$0xff]
    %v47 = vld [vmem:[%s2] sm:$0x1]
    %v49 = vlaneseq
    %v50 = vshrl.u32 %v49, 7
    %v51 = vsub.s32 0, %v50
    %v52 = vrot.slane %v47, %v51
    %vm54 = vcmask 261120
    %v56 = vsel %vm54, %v42, 0
    %58 = vmatprep.subr.mxu0 0.0
    %59 = vmatpush1.msra.mxu0 %v43
    %60 = vmatprep.subr.mxu0 0.0
    %61 = vmatpush1.msra.mxu0 %v44
    %62 = vmatprep.subr.mxu0 0.0
    %63 = vmatpush1.msra.mxu0 %v45
    %64 = vmatprep.subr.mxu0 0.0
    %65 = vmatpush1.msra.mxu0 %v46
    %66 = vmatprep.subr.mxu0 0.0
    %67 = vmatpush1.msra.mxu0 0.0
    %68 = vmatprep.subr.mxu0 0.0
    %69 = vmatpush1.msra.mxu0 0.0
    %70 = vmatprep.subr.mxu0 0.0
    %71 = vmatpush1.msra.mxu0 0.0
    %72 = vmatprep.subr.mxu0 0.0
    %73 = vmatpush1.msra.mxu0 0.0
    %74 = vmatprep.subr.mxu0 0.0
    %75 = vmatpush1.msra.mxu0 0.0
    %76 = vmatprep.subr.mxu0 0.0
    %77 = vmatpush1.msra.mxu0 0.0
    %78 = vmatprep.subr.mxu0 0.0
    %79 = vmatpush1.msra.mxu0 0.0
    %80 = vmatprep.subr.mxu0 0.0
    %81 = vmatpush1.msra.mxu0 0.0
    %82 = vmatprep.subr.mxu0 0.0
    %83 = vmatpush1.msra.mxu0 0.0
    %84 = vmatprep.subr.mxu0 0.0
    %85 = vmatpush1.msra.mxu0 0.0
    %86 = vmatprep.subr.mxu0 0.0
    %87 = vmatpush1.msra.mxu0 0.0
    %88 = vmatprep.subr.mxu0 0.0
    %89 = vmatpush1.msra.mxu0 0.0
    %90 = vmatprep.subr.mxu0 0.0
    %91 = vmatpush1.msra.mxu0 0.0
    %92 = vmatprep.subr.mxu0 0.0
    %93 = vmatpush1.msra.mxu0 0.0
    %94 = vmatprep.subr.mxu0 0.0
    %95 = vmatpush1.msra.mxu0 0.0
    %96 = vmatprep.subr.mxu0 0.0
    %97 = vmatpush1.msra.mxu0 0.0
    %98 = vmatprep.subr.mxu0 0.0
    %99 = vmatpush1.msra.mxu0 0.0
    %100 = vmatprep.subr.mxu0 0.0
    %101 = vmatpush1.msra.mxu0 0.0
    %102 = vmatprep.subr.mxu0 0.0
    %103 = vmatpush1.msra.mxu0 0.0
    %104 = vmatprep.subr.mxu0 0.0
    %105 = vmatpush1.msra.mxu0 0.0
    %106 = vmatprep.subr.mxu0 0.0
    %107 = vmatpush1.msra.mxu0 0.0
    %108 = vmatprep.subr.mxu0 0.0
    %109 = vmatpush1.msra.mxu0 0.0
    %110 = vmatprep.subr.mxu0 0.0
    %111 = vmatpush1.msra.mxu0 0.0
    %112 = vmatprep.subr.mxu0 0.0
    %113 = vmatpush1.msra.mxu0 0.0
    %114 = vmatprep.subr.mxu0 0.0
    %115 = vmatpush1.msra.mxu0 0.0
    %116 = vmatprep.subr.mxu0 0.0
    %117 = vmatpush1.msra.mxu0 0.0
    %118 = vmatprep.subr.mxu0 0.0
    %119 = vmatpush1.msra.mxu0 0.0
    %120 = vmatprep.subr.mxu0 0.0
    %121 = vmatpush1.msra.mxu0 0.0
    %122 = vmatprep.mubr.f32.mxu0 0.0
    %123 = vmatmul.mubr.f32.gmra.mrb[0].mxu0 %v56
    %v124 = vpop.f32.mrb[0].mxu0
    %v125 = vadd.f32 %v52, %v124
    %v126 = vpop.f32.mrb[0].mxu0
    %127 = vdwg.mxu0
    %v128 = vmax.f32 %v125, 0.0
    %v129 = vld [vmem:[%s3] sm:$0xff]
    %v130 = vld [vmem:[%s3 + $0x8] sm:$0xff]
    %v131 = vld [vmem:[%s3 + $0x10] sm:$0xff]
    %v132 = vld [vmem:[%s3 + $0x18] sm:$0xff]
    %v133 = vld [vmem:[%s3 + $0x20] sm:$0xff]
    %v134 = vld [vmem:[%s3 + $0x28] sm:$0xff]
    %v135 = vld [vmem:[%s3 + $0x30] sm:$0xff]
    %v136 = vld [vmem:[%s3 + $0x38] sm:$0xff]
    %v137 = vld [vmem:[%s3 + $0x40] sm:$0xff]
    %v138 = vld [vmem:[%s3 + $0x48] sm:$0xff]
    %v139 = vld [vmem:[%s3 + $0x50] sm:$0xff]
    %v140 = vld [vmem:[%s3 + $0x58] sm:$0xff]
    %v141 = vld [vmem:[%s3 + $0x60] sm:$0xff]
    %v142 = vld [vmem:[%s3 + $0x68] sm:$0xff]
    %v143 = vld [vmem:[%s3 + $0x70] sm:$0xff]
    %v144 = vld [vmem:[%s3 + $0x78] sm:$0xff]
    %v145 = vld [vmem:[%s4] sm:$0x1]
    %v147 = vlaneseq
    %v148 = vshrl.u32 %v147, 7
    %v149 = vsub.s32 0, %v148
    %v150 = vrot.slane %v145, %v149
    %152 = vmatprep.subr.mxu0 0.0
    %153 = vmatpush1.msra.mxu0 %v129
    %154 = vmatprep.subr.mxu0 0.0
    %155 = vmatpush1.msra.mxu0 %v130
    %156 = vmatprep.subr.mxu0 0.0
    %157 = vmatpush1.msra.mxu0 %v131
    %158 = vmatprep.subr.mxu0 0.0
    %159 = vmatpush1.msra.mxu0 %v132
    %160 = vmatprep.subr.mxu0 0.0
    %161 = vmatpush1.msra.mxu0 %v133
    %162 = vmatprep.subr.mxu0 0.0
    %163 = vmatpush1.msra.mxu0 %v134
    %164 = vmatprep.subr.mxu0 0.0
    %165 = vmatpush1.msra.mxu0 %v135
    %166 = vmatprep.subr.mxu0 0.0
    %167 = vmatpush1.msra.mxu0 %v136
    %168 = vmatprep.subr.mxu0 0.0
    %169 = vmatpush1.msra.mxu0 %v137
    %170 = vmatprep.subr.mxu0 0.0
    %171 = vmatpush1.msra.mxu0 %v138
    %172 = vmatprep.subr.mxu0 0.0
    %173 = vmatpush1.msra.mxu0 %v139
    %174 = vmatprep.subr.mxu0 0.0
    %175 = vmatpush1.msra.mxu0 %v140
    %176 = vmatprep.subr.mxu0 0.0
    %177 = vmatpush1.msra.mxu0 %v141
    %178 = vmatprep.subr.mxu0 0.0
    %179 = vmatpush1.msra.mxu0 %v142
    %180 = vmatprep.subr.mxu0 0.0
    %181 = vmatpush1.msra.mxu0 %v143
    %182 = vmatprep.subr.mxu0 0.0
    %183 = vmatpush1.msra.mxu0 %v144
    %184 = vmatprep.subr.mxu0 0.0
    %185 = vmatpush1.msra.mxu0 0.0
    %186 = vmatprep.subr.mxu0 0.0
    %187 = vmatpush1.msra.mxu0 0.0
    %188 = vmatprep.subr.mxu0 0.0
    %189 = vmatpush1.msra.mxu0 0.0
    %190 = vmatprep.subr.mxu0 0.0
    %191 = vmatpush1.msra.mxu0 0.0
    %192 = vmatprep.subr.mxu0 0.0
    %193 = vmatpush1.msra.mxu0 0.0
    %194 = vmatprep.subr.mxu0 0.0
    %195 = vmatpush1.msra.mxu0 0.0
    %196 = vmatprep.subr.mxu0 0.0
    %197 = vmatpush1.msra.mxu0 0.0
    %198 = vmatprep.subr.mxu0 0.0
    %199 = vmatpush1.msra.mxu0 0.0
    %200 = vmatprep.subr.mxu0 0.0
    %201 = vmatpush1.msra.mxu0 0.0
    %202 = vmatprep.subr.mxu0 0.0
    %203 = vmatpush1.msra.mxu0 0.0
    %204 = vmatprep.subr.mxu0 0.0
    %205 = vmatpush1.msra.mxu0 0.0
    %206 = vmatprep.subr.mxu0 0.0
    %207 = vmatpush1.msra.mxu0 0.0
    %208 = vmatprep.subr.mxu0 0.0
    %209 = vmatpush1.msra.mxu0 0.0
    %210 = vmatprep.subr.mxu0 0.0
    %211 = vmatpush1.msra.mxu0 0.0
    %212 = vmatprep.subr.mxu0 0.0
    %213 = vmatpush1.msra.mxu0 0.0
    %214 = vmatprep.subr.mxu0 0.0
    %215 = vmatpush1.msra.mxu0 0.0
    %216 = vmatprep.mubr.f32.mxu0 0.0
    %217 = vmatmul.mubr.f32.gmra.mrb[0].mxu0 %v128
    %v218 = vpop.f32.mrb[0].mxu0
    %v219 = vadd.f32 %v150, %v218
    %v220 = vpop.f32.mrb[0].mxu0
    %221 = vdwg.mxu0
    %v222 = vmax.f32 %v219, 0.0
    %v223 = vld [vmem:[%s5] sm:$0xff]
    %v224 = vld [vmem:[%s5 + $0x8] sm:$0xff]
    %v225 = vld [vmem:[%s5 + $0x10] sm:$0xff]
    %v226 = vld [vmem:[%s5 + $0x18] sm:$0xff]
    %v227 = vld [vmem:[%s5 + $0x20] sm:$0xff]
    %v228 = vld [vmem:[%s5 + $0x28] sm:$0xff]
    %v229 = vld [vmem:[%s5 + $0x30] sm:$0xff]
    %v230 = vld [vmem:[%s5 + $0x38] sm:$0xff]
    %v231 = vld [vmem:[%s5 + $0x40] sm:$0xff]
    %v232 = vld [vmem:[%s5 + $0x48] sm:$0xff]
    %v233 = vld [vmem:[%s5 + $0x50] sm:$0xff]
    %v234 = vld [vmem:[%s5 + $0x58] sm:$0xff]
    %v235 = vld [vmem:[%s5 + $0x60] sm:$0xff]
    %v236 = vld [vmem:[%s5 + $0x68] sm:$0xff]
    %v237 = vld [vmem:[%s5 + $0x70] sm:$0xff]
    %v238 = vld [vmem:[%s5 + $0x78] sm:$0xff]
    %v239 = vld [vmem:[#allocation2] sm:$0x1]
    %v241 = vlaneseq
    %v242 = vshrl.u32 %v241, 7
    %v243 = vsub.s32 0, %v242
    %v244 = vrot.slane %v239, %v243
    %246 = vmatprep.subr.mxu0 0.0
    %247 = vmatpush1.msra.mxu0 %v223
    %248 = vmatprep.subr.mxu0 0.0
    %249 = vmatpush1.msra.mxu0 %v224
    %250 = vmatprep.subr.mxu0 0.0
    %251 = vmatpush1.msra.mxu0 %v225
    %252 = vmatprep.subr.mxu0 0.0
    %253 = vmatpush1.msra.mxu0 %v226
    %254 = vmatprep.subr.mxu0 0.0
    %255 = vmatpush1.msra.mxu0 %v227
    %256 = vmatprep.subr.mxu0 0.0
    %257 = vmatpush1.msra.mxu0 %v228
    %258 = vmatprep.subr.mxu0 0.0
    %259 = vmatpush1.msra.mxu0 %v229
    %260 = vmatprep.subr.mxu0 0.0
    %261 = vmatpush1.msra.mxu0 %v230
    %262 = vmatprep.subr.mxu0 0.0
    %263 = vmatpush1.msra.mxu0 %v231
    %264 = vmatprep.subr.mxu0 0.0
    %265 = vmatpush1.msra.mxu0 %v232
    %266 = vmatprep.subr.mxu0 0.0
    %267 = vmatpush1.msra.mxu0 %v233
    %268 = vmatprep.subr.mxu0 0.0
    %269 = vmatpush1.msra.mxu0 %v234
    %270 = vmatprep.subr.mxu0 0.0
    %271 = vmatpush1.msra.mxu0 %v235
    %272 = vmatprep.subr.mxu0 0.0
    %273 = vmatpush1.msra.mxu0 %v236
    %274 = vmatprep.subr.mxu0 0.0
    %275 = vmatpush1.msra.mxu0 %v237
    %276 = vmatprep.subr.mxu0 0.0
    %277 = vmatpush1.msra.mxu0 %v238
    %278 = vmatprep.subr.mxu0 0.0
    %279 = vmatpush1.msra.mxu0 0.0
    %280 = vmatprep.subr.mxu0 0.0
    %281 = vmatpush1.msra.mxu0 0.0
    %282 = vmatprep.subr.mxu0 0.0
    %283 = vmatpush1.msra.mxu0 0.0
    %284 = vmatprep.subr.mxu0 0.0
    %285 = vmatpush1.msra.mxu0 0.0
    %286 = vmatprep.subr.mxu0 0.0
    %287 = vmatpush1.msra.mxu0 0.0
    %288 = vmatprep.subr.mxu0 0.0
    %289 = vmatpush1.msra.mxu0 0.0
    %290 = vmatprep.subr.mxu0 0.0
    %291 = vmatpush1.msra.mxu0 0.0
    %292 = vmatprep.subr.mxu0 0.0
    %293 = vmatpush1.msra.mxu0 0.0
    %294 = vmatprep.subr.mxu0 0.0
    %295 = vmatpush1.msra.mxu0 0.0
    %296 = vmatprep.subr.mxu0 0.0
    %297 = vmatpush1.msra.mxu0 0.0
    %298 = vmatprep.subr.mxu0 0.0
    %299 = vmatpush1.msra.mxu0 0.0
    %300 = vmatprep.subr.mxu0 0.0
    %301 = vmatpush1.msra.mxu0 0.0
    %302 = vmatprep.subr.mxu0 0.0
    %303 = vmatpush1.msra.mxu0 0.0
    %304 = vmatprep.subr.mxu0 0.0
    %305 = vmatpush1.msra.mxu0 0.0
    %306 = vmatprep.subr.mxu0 0.0
    %307 = vmatpush1.msra.mxu0 0.0
    %308 = vmatprep.subr.mxu0 0.0
    %309 = vmatpush1.msra.mxu0 0.0
    %310 = vmatprep.mubr.f32.mxu0 0.0
    %311 = vmatmul.mubr.f32.gmra.mrb[0].mxu0 %v222
    %v312 = vpop.f32.mrb[0].mxu0
    %v313 = vadd.f32 %v244, %v312
    %v314 = vpop.f32.mrb[0].mxu0
    %315 = vdwg.mxu0
    %vm316 = vcmask 7168
    %317 = vst.msk [vmem:[%s7] sm:$0xff] %vm316, %v313
    // Predicated region
    $region34: #{ffnn_forward_pallas.1} parent=1 // pred_check
      _
    $region35: #{ffnn_forward_pallas.1} parent=1 // pred_check_branch
      %319 = sbr.rel (0) target = $region37
    $region36: #{ffnn_forward_pallas.1} parent=1 // pred_region
      _
    $region37: #{ffnn_forward_pallas.1} parent=1 // pred_fallthru
      _
    // Predicated region
    $region38: #{ffnn_forward_pallas.1} parent=1 // pred_check
      _
    $region39: #{ffnn_forward_pallas.1} parent=1 // pred_check_branch
      %321 = sbr.rel (0) target = $region41
    $region40: #{ffnn_forward_pallas.1} parent=1 // pred_region
      _
    $region41: #{ffnn_forward_pallas.1} parent=1 // pred_fallthru
      _
    %322 = vsyncpa [#allocation4], 1

</llo_original>
